<compile_context>
chip_gen: v5e
topology: v5e:2x2
jax: 0.10.0
libtpu: 0.0.40
codegen_flags: <defaults>
</compile_context>

<pallas_src>
import functools

import jax
import jax.numpy as jnp
from jax.experimental import pallas as pl
from jax.experimental.pallas import tpu as pltpu


def _rms_norm_kernel(x_ref, w_ref, o_ref, *, inv_hidden, eps):
    # x_ref: (block_rows, hidden), w_ref: (1, hidden), o_ref like x_ref.
    x = x_ref[...].astype(jnp.float32)
    w = w_ref[...].astype(jnp.float32)                     # broadcasts over rows
    ms = jnp.sum(x * x, axis=-1, keepdims=True) * inv_hidden
    inv = jax.lax.rsqrt(ms + eps)                          # (block_rows, 1)
    o_ref[...] = (x * (inv * w)).astype(o_ref.dtype)


def _sublane(dtype):
    itemsize = jnp.dtype(dtype).itemsize
    return {1: 32, 2: 16, 4: 8}.get(itemsize, 8)


def _choose_tiling(rows, hidden, dtype):
    """Pick block_rows + vmem_limit_bytes for an HBM-bound row-wise kernel."""
    itemsize = jnp.dtype(dtype).itemsize
    sublane = _sublane(dtype)

    # Per-row VMEM bytes: double-buffered input + double-buffered output in
    # x.dtype, plus ~4 f32-sized full-tile temporaries (upcast x, x*x,
    # scale, product) live in the kernel body (dtype-aware for bf16/int8).
    per_row = hidden * (4 * itemsize + 4 * 4)

    # Roofline sweet spot: ~24 MiB working set (=> ~2-8 MiB input blocks for
    # hidden 4-8K). Bigger tiles add no bandwidth and only lengthen pipeline
    # fill/drain and VMEM pressure.
    budget = 24 << 20
    block_rows = max(budget // per_row, sublane)

    # Keep >= 8 grid steps when rows allow it, so v7x's two TensorCores each
    # get >= 4 pipelined steps (no exposed first-load / last-store per core).
    min_steps = 8
    if rows >= min_steps * sublane:
        max_block = rows // min_steps
        block_rows = min(block_rows, max_block)

    # Round to a sublane multiple; a single full-extent block is legal too.
    block_rows = max((block_rows // sublane) * sublane, sublane)
    if block_rows >= rows:
        block_rows = rows

    needed = block_rows * per_row + 2 * hidden * 4  # tiles + weight copies
    vmem_limit = int(min(needed + (8 << 20), 48 << 20))
    vmem_limit = max(vmem_limit, 24 << 20)
    return block_rows, vmem_limit


def rms_norm(x, weight, *, eps=1e-05, block_rows=None):
    """RMSNorm over the last axis of x. weight has shape (hidden,)."""
    orig_shape = x.shape
    hidden = orig_shape[-1]
    rows = 1
    for d in orig_shape[:-1]:
        rows *= d

    x2d = x.reshape(rows, hidden)
    w2d = weight.reshape(1, hidden)

    auto_block, vmem_limit = _choose_tiling(rows, hidden, x.dtype)
    if block_rows is None:
        block_rows = auto_block
    else:
        # Validate user-supplied block_rows: clamp to rows and round to the
        # dtype's sublane multiple so the BlockSpec stays legal.
        sublane = _sublane(x.dtype)
        block_rows = max(int(block_rows), 1)
        block_rows = max((block_rows // sublane) * sublane, sublane)
        if block_rows >= rows:
            block_rows = rows

    grid = (pl.cdiv(rows, block_rows),)

    kernel = functools.partial(
        _rms_norm_kernel, inv_hidden=1.0 / float(hidden), eps=float(eps)
    )

    out = pl.pallas_call(
        kernel,
        out_shape=jax.ShapeDtypeStruct((rows, hidden), x.dtype),
        grid_spec=pltpu.PrefetchScalarGridSpec(
            num_scalar_prefetch=0,
            grid=grid,
            in_specs=[
                pl.BlockSpec((block_rows, hidden), lambda i: (i, 0)),
                pl.BlockSpec((1, hidden), lambda i: (0, 0)),
            ],
            out_specs=pl.BlockSpec((block_rows, hidden), lambda i: (i, 0)),
        ),
        compiler_params=pltpu.CompilerParams(
            dimension_semantics=("parallel",),
            vmem_limit_bytes=vmem_limit,
        ),
    )(x2d, w2d)

    return out.reshape(orig_shape)


if __name__ == "__main__":
    key = jax.random.PRNGKey(0)
    batch, seq, hidden = 2, 8, 32

    x = jax.random.normal(key, (batch, seq, hidden), dtype=jnp.float32)
    # Deterministic parameter init matching nn.Parameter(torch.ones(dim)).
    weight = jnp.ones((hidden,), dtype=jnp.float32)

    out = rms_norm(x, weight)
    out = jax.block_until_ready(out)

    # Reference check in plain JAX (same math as the PyTorch module).
    ref = x * jax.lax.rsqrt(jnp.mean(x * x, axis=-1, keepdims=True) + 1e-05) * weight
    assert out.shape == x.shape and out.dtype == x.dtype
    assert jnp.allclose(out, ref, atol=1e-5, rtol=1e-5)

    print("KERNEL_OK")
</pallas_src>

<mosaic_0001>
module attributes {stable_mosaic.version = 11 : i64} {
  func.func @_rms_norm_kernel(%arg0: i32, %arg1: memref<16x32xf32, #tpu.memory_space<vmem>>, %arg2: memref<1x32xf32, #tpu.memory_space<vmem>>, %arg3: memref<16x32xf32, #tpu.memory_space<vmem>>) attributes {dimension_semantics = [#tpu.dimension_semantics<parallel>], iteration_bounds = array<i64: 1>, scalar_prefetch = 0 : i64, scratch_operands = 0 : i64, tpu.core_type = #tpu.core_type<tc>, window_params = [{transform_indices = @transform_0, window_bounds = array<i64: 16, 32>}, {pipeline_mode = #tpu.pipeline_mode<synchronous>, transform_indices = @transform_1, window_bounds = array<i64: 1, 32>}, {transform_indices = @transform_2, window_bounds = array<i64: 16, 32>}]} {
    %c0 = arith.constant 0 : index
    %c0_0 = arith.constant 0 : index
    %0 = vector.load %arg1[%c0, %c0_0] : memref<16x32xf32, #tpu.memory_space<vmem>>, vector<16x32xf32>
    %c0_1 = arith.constant 0 : index
    %c0_2 = arith.constant 0 : index
    %1 = vector.load %arg2[%c0_1, %c0_2] : memref<1x32xf32, #tpu.memory_space<vmem>>, vector<1x32xf32>
    %2 = arith.mulf %0, %0 : vector<16x32xf32>
    %cst = arith.constant dense<0.000000e+00> : vector<16xf32>
    %3 = vector.multi_reduction <add>, %2, %cst [1] : vector<16x32xf32> to vector<16xf32>
    %4 = vector.shape_cast %3 : vector<16xf32> to vector<16x1xf32>
    %cst_3 = arith.constant 3.125000e-02 : f32
    %5 = vector.broadcast %cst_3 : f32 to vector<16x1xf32>
    %6 = arith.mulf %4, %5 : vector<16x1xf32>
    %cst_4 = arith.constant 9.99999974E-6 : f32
    %7 = vector.broadcast %cst_4 : f32 to vector<16x1xf32>
    %8 = arith.addf %6, %7 : vector<16x1xf32>
    %9 = math.rsqrt %8 : vector<16x1xf32>
    %10 = vector.broadcast %9 : vector<16x1xf32> to vector<16x32xf32>
    %11 = vector.broadcast %1 : vector<1x32xf32> to vector<16x32xf32>
    %12 = arith.mulf %10, %11 : vector<16x32xf32>
    %13 = arith.mulf %0, %12 : vector<16x32xf32>
    %c0_5 = arith.constant 0 : index
    %c0_6 = arith.constant 0 : index
    %14 = vector.load %arg3[%c0_5, %c0_6] : memref<16x32xf32, #tpu.memory_space<vmem>>, vector<16x32xf32>
    tpu.vector_store %arg3[%c0_5, %c0_6], %13 {strides = array<i32>} : memref<16x32xf32, #tpu.memory_space<vmem>>, vector<16x32xf32>,
    return
  }
  func.func @transform_0(%arg0: i32) -> (i32, i32) {
    %c0_i32 = arith.constant 0 : i32
    %c0_i32_0 = arith.constant 0 : i32
    return %arg0, %c0_i32 : i32, i32
  }
  func.func @transform_1(%arg0: i32) -> (i32, i32) {
    %c0_i32 = arith.constant 0 : i32
    %c0_i32_0 = arith.constant 0 : i32
    %c0_i32_1 = arith.constant 0 : i32
    return %c0_i32, %c0_i32_0 : i32, i32
  }
  func.func @transform_2(%arg0: i32) -> (i32, i32) {
    %c0_i32 = arith.constant 0 : i32
    %c0_i32_0 = arith.constant 0 : i32
    return %arg0, %c0_i32 : i32, i32
  }
}

</mosaic_0001>

<llo_original>
// kernel: tpu_custom_call.1
$region0: #{tpu_custom_call.1}
  #allocation0 [shape = 'u32[]', space=smem, size = 0x4, offset = 0x4, fixed_abs, tag = 'smem constant byte address 0x4 - core index']
  #allocation1 [shape = 'u32[72,128]{1,0:T(1,128)}', space=vmem, size = 0x9000, scoped, tag = 'internal scratch']
  %s0 = inlined_call_operand.hbm [shape: f32[16,32], index: 0, kind: input, shape index: {}]
  %s1 = inlined_call_operand.hbm [shape: f32[1,32], index: 1, kind: input, shape index: {}]
  %s2 = inlined_call_operand.hbm [shape: f32[16,32], index: 2, kind: output, shape index: {}]
  %s3 = sld [smem:[#allocation0]]
  $region26: #{tpu_custom_call.1} parent=0
    _
  %s5 = ssub.s32 1, %s3
  %s6 = scalar_select 0, %s5, %s3
  $region1: #{tpu_custom_call.1} parent=0
    #allocation2 [shape = 'u8[8192]{0}', space=vmem, size = 0x2000, scoped, tag = 'input window, operand 0, single buffered']
    #allocation3 [shape = 's32[1]{0}', space=sflag, size = 0x4, scoped, tag = 'scoped memory for tpu_custom_call.1']
    #allocation4 [shape = 's32[1]{0}', space=sflag, size = 0x4, scoped, tag = 'scoped memory for tpu_custom_call.1']
    #allocation5 [shape = 'u8[512]{0}', space=vmem, size = 0x400, scoped, tag = 'input window, operand 1, single buffered']
    #allocation6 [shape = 's32[1]{0}', space=sflag, size = 0x4, scoped, tag = 'scoped memory for tpu_custom_call.1']
    #allocation7 [shape = 'u8[8192]{0}', space=vmem, size = 0x2000, scoped, tag = 'output window, operand 0, single buffered']
    %7 = vsyncpa [#allocation3], 0
    %8 = vsyncpa [#allocation6], 0
    %9 = vsyncpa [#allocation4], 0
    // Predicated region
    $region2: #{tpu_custom_call.1} parent=1 // pred_check
      _
    $region3: #{tpu_custom_call.1} parent=1 // pred_check_branch
      %11 = sbr.rel (0) target = $region5
    $region4: #{tpu_custom_call.1} parent=1 // pred_region
      %13 = vsyncadd [#allocation3], 0
      %s14 = sshll.u32 %s0, 4
      %s15 = int_to_ptr.hbm [resolvable:$true] %s14
      %s16 = sshll.u32 [#allocation2], 4
      %s17 = int_to_ptr.vmem [resolvable:$true] %s16
      %22 = dma.hbm_to_vmem [thread:$0]  %s15, 256, %s17, [#allocation3], 128, 128, 8
    $region5: #{tpu_custom_call.1} parent=1 // pred_fallthru
      _
    // Predicated region
    $region6: #{tpu_custom_call.1} parent=1 // pred_check
      _
    $region7: #{tpu_custom_call.1} parent=1 // pred_check_branch
      %24 = sbr.rel (0) target = $region9
    $region8: #{tpu_custom_call.1} parent=1 // pred_region
      %26 = vsyncadd [#allocation6], 0
      %s28 = sshll.u32 %s1, 4
      %s29 = int_to_ptr.hbm [resolvable:$true] %s28
      %s30 = sshll.u32 [#allocation5], 4
      %s31 = int_to_ptr.vmem [resolvable:$true] %s30
      %33 = dma.hbm_to_vmem [thread:$0]  %s29, 16, %s31, [#allocation6]
    $region9: #{tpu_custom_call.1} parent=1 // pred_fallthru
      _
    // Predicated region
    $region10: #{tpu_custom_call.1} parent=1 // pred_check
      _
    $region11: #{tpu_custom_call.1} parent=1 // pred_check_branch
      %35 = sbr.rel (0) target = $region13
    $region12: #{tpu_custom_call.1} parent=1 // pred_region
      %37 = dma.done [#allocation3], 256
    $region13: #{tpu_custom_call.1} parent=1 // pred_fallthru
      _
    // Predicated region
    $region14: #{tpu_custom_call.1} parent=1 // pred_check
      _
    $region15: #{tpu_custom_call.1} parent=1 // pred_check_branch
      %39 = sbr.rel (0) target = $region17
    $region16: #{tpu_custom_call.1} parent=1 // pred_region
      %41 = dma.done [#allocation6], 16
    $region17: #{tpu_custom_call.1} parent=1 // pred_fallthru
      _
    %v42 = vld [vmem:[#allocation2] sm:$0xff]
    %v43 = vld [vmem:[#allocation2 + $0x8] sm:$0xff]
    %v44 = vld [vmem:[#allocation5] sm:$0x1]
    %v45 = vmul.f32 %v42, %v42
    %v46 = vmul.f32 %v43, %v43
    %vm47 = vcmask 261120
    %v48 = vsel %vm47, %v45, 0.0
    %49 = vadd.xlane.f32.xlu0 %v48
    %v50 = vpop.xlane.xlu0 %49
    %v51 = vsel %vm47, %v46, 0.0
    %52 = vadd.xlane.f32.xlu0 %v51
    %v53 = vpop.xlane.xlu0 %52
    %v54 = vmul.f32 %v50, 0.03125
    %v55 = vmul.f32 %v53, 0.03125
    %v56 = vadd.f32 %v54, 1e-05
    %v57 = vadd.f32 %v55, 1e-05
    %v58 = vrsqrt.pop %v56
    %v59 = vmul.f32 %v58, %v56
    %v60 = vmul.f32 %v59, %v58
    %v61 = vmul.f32 0.5, %v60
    %v62 = vsub.f32 1.5, %v61
    %v63 = vmul.f32 %v58, %v62
    %vm64 = vweird.f32 %v56
    %vm65 = vweird.f32 %v58
    %vm66 = vmor %vm64, %vm65
    %v67 = vsel %vm66, %v58, %v63
    %v68 = vrsqrt.pop %v57
    %v69 = vmul.f32 %v68, %v57
    %v70 = vmul.f32 %v69, %v68
    %v71 = vmul.f32 0.5, %v70
    %v72 = vsub.f32 1.5, %v71
    %v73 = vmul.f32 %v68, %v72
    %vm74 = vweird.f32 %v57
    %vm75 = vweird.f32 %v68
    %vm76 = vmor %vm74, %vm75
    %v77 = vsel %vm76, %v68, %v73
    %v79 = vperm.slane %v44, 0
    %v81 = vmul.f32 %v67, %v79
    %v82 = vmul.f32 %v77, %v79
    %v83 = vmul.f32 %v42, %v81
    %v84 = vmul.f32 %v43, %v82
    %85 = vst.msk [vmem:[#allocation7] sm:$0xff] %vm47, %v83
    %86 = vst.msk [vmem:[#allocation7 + $0x8] sm:$0xff] %vm47, %v84
    // Predicated region
    $region18: #{tpu_custom_call.1} parent=1 // pred_check
      _
    $region19: #{tpu_custom_call.1} parent=1 // pred_check_branch
      %88 = sbr.rel (0) target = $region21
    $region20: #{tpu_custom_call.1} parent=1 // pred_region
      %90 = vsyncadd [#allocation4], 0
      %s91 = sshll.u32 [#allocation7], 4
      %s92 = int_to_ptr.vmem [resolvable:$true] %s91
      %s93 = sshll.u32 %s2, 4
      %s94 = int_to_ptr.hbm [resolvable:$true] %s93
      %99 = dma.vmem_to_hbm [thread:$0]  %s92, 256, %s94, [#allocation4], 128, 128, 8
    $region21: #{tpu_custom_call.1} parent=1 // pred_fallthru
      _
    // Predicated region
    $region22: #{tpu_custom_call.1} parent=1 // pred_check
      _
    $region23: #{tpu_custom_call.1} parent=1 // pred_check_branch
      %101 = sbr.rel (0) target = $region25
    $region24: #{tpu_custom_call.1} parent=1 // pred_region
      %103 = dma.done [#allocation4], 256
    $region25: #{tpu_custom_call.1} parent=1 // pred_fallthru
      _
    %104 = vsyncpa [#allocation3], 1
    %105 = vsyncpa [#allocation6], 1
    %106 = vsyncpa [#allocation4], 1

</llo_original>
